<compile_context>
chip_gen: v7x
topology: tpu7x:2x2x1
jax: 0.10.0
libtpu: 0.0.40
codegen_flags: <defaults>
</compile_context>

<pallas_src>
import functools

import jax
import jax.numpy as jnp
from jax.experimental import pallas as pl
from jax.experimental.pallas import tpu as pltpu  # noqa: F401  (TPU backend params if needed)

NUM_HEADS = 4


def _round_up(n, m):
    return ((n + m - 1) // m) * m


def _full_spec(shape):
    # Whole-array block, grid=(), so index_map takes no args.
    return pl.BlockSpec(shape, lambda: (0,) * len(shape))


def out_module_kernel(x_ref, slab_ref, o_ref, *, num_heads, input_dim, hidden,
                      head_dim, out_pad, offs):
    r_w1, r_wqkv, r_wout, r_w2, r_bias = offs
    f32 = jnp.float32

    x = x_ref[...]                                                # (B, D_in)

    # Static, sublane-aligned slices of the packed parameter slab.
    w1 = slab_ref[r_w1:r_w1 + input_dim, 0:hidden]                # (D_in, H)
    wqkv = slab_ref[r_wqkv:r_wqkv + hidden, 0:3 * hidden]         # (H, 3H)
    wout = slab_ref[r_wout:r_wout + hidden, 0:hidden]             # (H, H)
    w2 = slab_ref[r_w2:r_w2 + hidden, 0:out_pad]                  # (H, out_pad)
    b1 = slab_ref[r_bias + 0:r_bias + 1, 0:hidden]                # (1, H)
    bqkv = slab_ref[r_bias + 1:r_bias + 2, 0:3 * hidden]          # (1, 3H)
    bout = slab_ref[r_bias + 2:r_bias + 3, 0:hidden]              # (1, H)
    b2 = slab_ref[r_bias + 3:r_bias + 4, 0:out_pad]               # (1, out_pad)

    # fc1 + ReLU (one MXU pass).
    h = jnp.maximum(jnp.dot(x, w1, preferred_element_type=f32) + b1, 0.0)

    # TODO(synk): dropout is identity here (eval mode); training-mode dropout
    # would need pltpu.prng_seed + pltpu.prng_random_bits masking.

    # Fused QKV projection: ONE (B, hidden) x (hidden, 3*hidden) MXU pass.
    # 1/sqrt(head_dim) is already folded into the Q columns / Q bias.
    qkv = jnp.dot(h, wqkv, preferred_element_type=f32) + bqkv     # (B, 3H)

    # Split into per-head stacks (num_heads, B, head_dim) with static,
    # 8-aligned lane slices (small relayout; scores/PV stay head-batched).
    def head_stack(part):
        base = part * hidden
        return jnp.stack(
            [qkv[:, base + i * head_dim: base + (i + 1) * head_dim]
             for i in range(num_heads)], axis=0)

    q = head_stack(0)   # (nh, B, hd), already scaled by 1/sqrt(head_dim)
    k = head_stack(1)
    v = head_stack(2)

    # Head-batched scores 'hbd,hkd->hbk'.  At head_dim=8 the implied k
    # transpose is a trivial XLU op; pre-transposing only matters at >=128.
    s = jax.lax.dot_general(q, k, (((2,), (2,)), ((0,), (0,))),
                            preferred_element_type=f32)           # (nh, B, B)
    s = s - jnp.max(s, axis=-1, keepdims=True)
    p = jnp.exp(s)
    # Exact reciprocal: approx vrcp (~1e-3 worst case) risks the 1e-4 check.
    p = p * pl.reciprocal(jnp.sum(p, axis=-1, keepdims=True), approx=False)

    # Head-batched PV 'hbk,hkd->hbd'.
    o = jax.lax.dot_general(p, v, (((2,), (1,)), ((0,), (0,))),
                            preferred_element_type=f32)           # (nh, B, hd)

    # Reassemble heads along lanes (cheap relayout), then ONE fused
    # (B, hidden) x (hidden, hidden) out-projection MXU pass.
    attn_in = jnp.concatenate([o[i] for i in range(num_heads)], axis=-1)
    attn = jnp.dot(attn_in, wout, preferred_element_type=f32) + bout

    # fc2 into a lane-dense out_pad-wide slab (unmasked vst); bias row padded.
    o_ref[...] = jnp.dot(attn, w2, preferred_element_type=f32) + b2


def prepare_params(params, num_heads=NUM_HEADS):
    """Pack all PyTorch-style params into one lane-dense (rows, 128k) slab."""
    (w1, b1, w_in, b_in, w_out, b_out, w2, b2) = params
    input_dim, hidden = w1.shape
    assert hidden % num_heads == 0, "hidden_dim must be divisible by num_heads"
    head_dim = hidden // num_heads
    out_dim = w2.shape[1]
    scale = 1.0 / float(head_dim) ** 0.5

    # Fold 1/sqrt(head_dim) into the Q columns of the packed QKV weight/bias.
    col_scale = jnp.concatenate(
        [jnp.full((hidden,), scale, jnp.float32),
         jnp.ones((2 * hidden,), jnp.float32)], axis=0)
    wqkv = w_in * col_scale[None, :]              # (hidden, 3*hidden)
    bqkv = b_in * col_scale[None, :]              # (1, 3*hidden)

    lanes = _round_up(max(3 * hidden, hidden, out_dim), 128)
    out_pad = _round_up(out_dim, 128)             # unmasked final vst

    # Sublane-aligned row offsets for each weight block + one bias-row block.
    r_w1 = 0
    r_wqkv = r_w1 + _round_up(input_dim, 8)
    r_wout = r_wqkv + _round_up(hidden, 8)
    r_w2 = r_wout + _round_up(hidden, 8)
    r_bias = r_w2 + _round_up(hidden, 8)
    rows = r_bias + 8

    slab = jnp.zeros((rows, lanes), jnp.float32)
    slab = slab.at[r_w1:r_w1 + input_dim, :hidden].set(w1)
    slab = slab.at[r_wqkv:r_wqkv + hidden, :3 * hidden].set(wqkv)
    slab = slab.at[r_wout:r_wout + hidden, :hidden].set(w_out)
    slab = slab.at[r_w2:r_w2 + hidden, :out_dim].set(w2)
    slab = slab.at[r_bias + 0, :hidden].set(b1[0])
    slab = slab.at[r_bias + 1, :3 * hidden].set(bqkv[0])
    slab = slab.at[r_bias + 2, :hidden].set(b_out[0])
    slab = slab.at[r_bias + 3, :out_dim].set(b2[0])

    meta = dict(num_heads=num_heads, input_dim=input_dim, hidden=hidden,
                head_dim=head_dim, out_dim=out_dim, out_pad=out_pad,
                offs=(r_w1, r_wqkv, r_wout, r_w2, r_bias))
    return slab, meta


def out_module_forward(x, slab, meta):
    B = x.shape[0]
    out_pad = meta["out_pad"]
    kernel = functools.partial(
        out_module_kernel,
        num_heads=meta["num_heads"], input_dim=meta["input_dim"],
        hidden=meta["hidden"], head_dim=meta["head_dim"],
        out_pad=out_pad, offs=meta["offs"])
    # Only 2 input DMAs: activations + the packed parameter slab.
    y_pad = pl.pallas_call(
        kernel,
        out_shape=jax.ShapeDtypeStruct((B, out_pad), jnp.float32),
        in_specs=[_full_spec(x.shape), _full_spec(slab.shape)],
        out_specs=_full_spec((B, out_pad)),
    )(x, slab)
    return y_pad[:, :meta["out_dim"]]


def reference_forward(x, params):
    (w1, b1, w_in, b_in, w_out, b_out, w2, b2) = params
    h = jnp.maximum(x @ w1 + b1, 0.0)
    hidden = h.shape[-1]
    head_dim = hidden // NUM_HEADS
    qkv = h @ w_in + b_in
    q, k, v = qkv[:, :hidden], qkv[:, hidden:2 * hidden], qkv[:, 2 * hidden:]
    outs = []
    for hh in range(NUM_HEADS):
        lo, hi = hh * head_dim, (hh + 1) * head_dim
        qh = q[:, lo:hi] / jnp.sqrt(head_dim).astype(jnp.float32)
        s = qh @ k[:, lo:hi].T
        p = jax.nn.softmax(s, axis=-1)
        outs.append(p @ v[:, lo:hi])
    attn = jnp.concatenate(outs, axis=-1) @ w_out + b_out
    return attn @ w2 + b2


def init_params(key, input_dim, hidden_dim, output_dim):
    ks = jax.random.split(key, 8)
    scale = 0.1
    w1 = scale * jax.random.normal(ks[0], (input_dim, hidden_dim), jnp.float32)
    b1 = scale * jax.random.normal(ks[1], (1, hidden_dim), jnp.float32)
    w_in = scale * jax.random.normal(ks[2], (hidden_dim, 3 * hidden_dim), jnp.float32)
    b_in = scale * jax.random.normal(ks[3], (1, 3 * hidden_dim), jnp.float32)
    w_out = scale * jax.random.normal(ks[4], (hidden_dim, hidden_dim), jnp.float32)
    b_out = scale * jax.random.normal(ks[5], (1, hidden_dim), jnp.float32)
    w2 = scale * jax.random.normal(ks[6], (hidden_dim, output_dim), jnp.float32)
    b2 = scale * jax.random.normal(ks[7], (1, output_dim), jnp.float32)
    return (w1, b1, w_in, b_in, w_out, b_out, w2, b2)


if __name__ == "__main__":
    B, INPUT_DIM, HIDDEN_DIM, OUTPUT_DIM = 8, 32, 32, 1
    key = jax.random.PRNGKey(0)
    kx, kp = jax.random.split(key)
    x = jax.random.normal(kx, (B, INPUT_DIM), jnp.float32)
    params = init_params(kp, INPUT_DIM, HIDDEN_DIM, OUTPUT_DIM)

    slab, meta = prepare_params(params)
    y = out_module_forward(x, slab, meta)
    y = jax.block_until_ready(y)

    y_ref = reference_forward(x, params)
    assert y.shape == (B, OUTPUT_DIM)
    assert jnp.allclose(y, y_ref, atol=1e-4, rtol=1e-4), "mismatch vs reference"

    print("KERNEL_OK")
</pallas_src>

<mosaic_0001>
module attributes {stable_mosaic.version = 11 : i64} {
  func.func @out_module_kernel(%arg0: memref<8x32xf32, #tpu.memory_space<vmem>>, %arg1: memref<136x128xf32, #tpu.memory_space<vmem>>, %arg2: memref<8x128xf32, #tpu.memory_space<vmem>>) attributes {dimension_semantics = [], scalar_prefetch = 0 : i64, scratch_operands = 0 : i64, tpu.core_type = #tpu.core_type<tc>} {
    %c0 = arith.constant 0 : index
    %c0_0 = arith.constant 0 : index
    %0 = vector.load %arg0[%c0, %c0_0] : memref<8x32xf32, #tpu.memory_space<vmem>>, vector<8x32xf32>
    %c0_1 = arith.constant 0 : index
    %c0_2 = arith.constant 0 : index
    %1 = vector.load %arg1[%c0_1, %c0_2] : memref<136x128xf32, #tpu.memory_space<vmem>>, vector<32x32xf32>
    %c32 = arith.constant 32 : index
    %c0_3 = arith.constant 0 : index
    %2 = vector.load %arg1[%c32, %c0_3] : memref<136x128xf32, #tpu.memory_space<vmem>>, vector<32x96xf32>
    %c64 = arith.constant 64 : index
    %c0_4 = arith.constant 0 : index
    %3 = vector.load %arg1[%c64, %c0_4] : memref<136x128xf32, #tpu.memory_space<vmem>>, vector<32x32xf32>
    %c96 = arith.constant 96 : index
    %c0_5 = arith.constant 0 : index
    %4 = vector.load %arg1[%c96, %c0_5] : memref<136x128xf32, #tpu.memory_space<vmem>>, vector<32x128xf32>
    %c128 = arith.constant 128 : index
    %c0_6 = arith.constant 0 : index
    %5 = vector.load %arg1[%c128, %c0_6] : memref<136x128xf32, #tpu.memory_space<vmem>>, vector<1x32xf32>
    %c129 = arith.constant 129 : index
    %c0_7 = arith.constant 0 : index
    %6 = vector.load %arg1[%c129, %c0_7] : memref<136x128xf32, #tpu.memory_space<vmem>>, vector<1x96xf32>
    %c130 = arith.constant 130 : index
    %c0_8 = arith.constant 0 : index
    %7 = vector.load %arg1[%c130, %c0_8] : memref<136x128xf32, #tpu.memory_space<vmem>>, vector<1x32xf32>
    %c131 = arith.constant 131 : index
    %c0_9 = arith.constant 0 : index
    %8 = vector.load %arg1[%c131, %c0_9] : memref<136x128xf32, #tpu.memory_space<vmem>>, vector<1x128xf32>
    %cst = arith.constant dense<0.000000e+00> : vector<8x32xf32>
    %9 = tpu.matmul %0, %1, %cst {dimension_numbers = #tpu.dot_dimension_numbers<[1], [0], [0], [1], [0, 0, 1, 1], [], []>} : vector<8x32xf32>, vector<32x32xf32>, vector<8x32xf32> -> vector<8x32xf32>
    %10 = vector.broadcast %5 : vector<1x32xf32> to vector<8x32xf32>
    %11 = arith.addf %9, %10 : vector<8x32xf32>
    %cst_10 = arith.constant 0.000000e+00 : f32
    %12 = vector.broadcast %cst_10 : f32 to vector<8x32xf32>
    %13 = arith.maximumf %11, %12 : vector<8x32xf32>
    %cst_11 = arith.constant dense<0.000000e+00> : vector<8x96xf32>
    %14 = tpu.matmul %13, %2, %cst_11 {dimension_numbers = #tpu.dot_dimension_numbers<[1], [0], [0], [1], [0, 0, 1, 1], [], []>} : vector<8x32xf32>, vector<32x96xf32>, vector<8x96xf32> -> vector<8x96xf32>
    %15 = vector.broadcast %6 : vector<1x96xf32> to vector<8x96xf32>
    %16 = arith.addf %14, %15 : vector<8x96xf32>
    %17 = vector.extract_strided_slice %16 {offsets = [0, 0], sizes = [8, 8], strides = [1, 1]} : vector<8x96xf32> to vector<8x8xf32>
    %18 = vector.extract_strided_slice %16 {offsets = [0, 8], sizes = [8, 8], strides = [1, 1]} : vector<8x96xf32> to vector<8x8xf32>
    %19 = vector.extract_strided_slice %16 {offsets = [0, 16], sizes = [8, 8], strides = [1, 1]} : vector<8x96xf32> to vector<8x8xf32>
    %20 = vector.extract_strided_slice %16 {offsets = [0, 24], sizes = [8, 8], strides = [1, 1]} : vector<8x96xf32> to vector<8x8xf32>
    %21 = vector.shape_cast %17 : vector<8x8xf32> to vector<1x8x8xf32>
    %22 = vector.shape_cast %18 : vector<8x8xf32> to vector<1x8x8xf32>
    %23 = vector.shape_cast %19 : vector<8x8xf32> to vector<1x8x8xf32>
    %24 = vector.shape_cast %20 : vector<8x8xf32> to vector<1x8x8xf32>
    %25 = tpu.concatenate %21, %22, %23, %24 in 0 : vector<1x8x8xf32>, vector<1x8x8xf32>, vector<1x8x8xf32>, vector<1x8x8xf32> -> vector<4x8x8xf32>
    %26 = vector.extract_strided_slice %16 {offsets = [0, 32], sizes = [8, 8], strides = [1, 1]} : vector<8x96xf32> to vector<8x8xf32>
    %27 = vector.extract_strided_slice %16 {offsets = [0, 40], sizes = [8, 8], strides = [1, 1]} : vector<8x96xf32> to vector<8x8xf32>
    %28 = vector.extract_strided_slice %16 {offsets = [0, 48], sizes = [8, 8], strides = [1, 1]} : vector<8x96xf32> to vector<8x8xf32>
    %29 = vector.extract_strided_slice %16 {offsets = [0, 56], sizes = [8, 8], strides = [1, 1]} : vector<8x96xf32> to vector<8x8xf32>
    %30 = vector.shape_cast %26 : vector<8x8xf32> to vector<1x8x8xf32>
    %31 = vector.shape_cast %27 : vector<8x8xf32> to vector<1x8x8xf32>
    %32 = vector.shape_cast %28 : vector<8x8xf32> to vector<1x8x8xf32>
    %33 = vector.shape_cast %29 : vector<8x8xf32> to vector<1x8x8xf32>
    %34 = tpu.concatenate %30, %31, %32, %33 in 0 : vector<1x8x8xf32>, vector<1x8x8xf32>, vector<1x8x8xf32>, vector<1x8x8xf32> -> vector<4x8x8xf32>
    %35 = vector.extract_strided_slice %16 {offsets = [0, 64], sizes = [8, 8], strides = [1, 1]} : vector<8x96xf32> to vector<8x8xf32>
    %36 = vector.extract_strided_slice %16 {offsets = [0, 72], sizes = [8, 8], strides = [1, 1]} : vector<8x96xf32> to vector<8x8xf32>
    %37 = vector.extract_strided_slice %16 {offsets = [0, 80], sizes = [8, 8], strides = [1, 1]} : vector<8x96xf32> to vector<8x8xf32>
    %38 = vector.extract_strided_slice %16 {offsets = [0, 88], sizes = [8, 8], strides = [1, 1]} : vector<8x96xf32> to vector<8x8xf32>
    %39 = vector.shape_cast %35 : vector<8x8xf32> to vector<1x8x8xf32>
    %40 = vector.shape_cast %36 : vector<8x8xf32> to vector<1x8x8xf32>
    %41 = vector.shape_cast %37 : vector<8x8xf32> to vector<1x8x8xf32>
    %42 = vector.shape_cast %38 : vector<8x8xf32> to vector<1x8x8xf32>
    %43 = tpu.concatenate %39, %40, %41, %42 in 0 : vector<1x8x8xf32>, vector<1x8x8xf32>, vector<1x8x8xf32>, vector<1x8x8xf32> -> vector<4x8x8xf32>
    %cst_12 = arith.constant dense<0.000000e+00> : vector<4x8x8xf32>
    %44 = tpu.matmul %25, %34, %cst_12 {dimension_numbers = #tpu.dot_dimension_numbers<[2], [2], [1], [1], [0, 0, 0, 1, 1, 1], [0], [0]>} : vector<4x8x8xf32>, vector<4x8x8xf32>, vector<4x8x8xf32> -> vector<4x8x8xf32>
    %cst_13 = arith.constant dense<0xFF800000> : vector<4x8xf32>
    %45 = vector.multi_reduction <maximumf>, %44, %cst_13 [2] : vector<4x8x8xf32> to vector<4x8xf32>
    %46 = vector.shape_cast %45 : vector<4x8xf32> to vector<4x8x1xf32>
    %47 = vector.broadcast %46 : vector<4x8x1xf32> to vector<4x8x8xf32>
    %48 = arith.subf %44, %47 : vector<4x8x8xf32>
    %49 = math.exp %48 : vector<4x8x8xf32>
    %cst_14 = arith.constant dense<0.000000e+00> : vector<4x8xf32>
    %50 = vector.multi_reduction <add>, %49, %cst_14 [2] : vector<4x8x8xf32> to vector<4x8xf32>
    %51 = vector.shape_cast %50 : vector<4x8xf32> to vector<4x8x1xf32>
    %52 = tpu.reciprocal %51 : vector<4x8x1xf32> -> vector<4x8x1xf32>
    %53 = vector.broadcast %52 : vector<4x8x1xf32> to vector<4x8x8xf32>
    %54 = arith.mulf %49, %53 : vector<4x8x8xf32>
    %cst_15 = arith.constant dense<0.000000e+00> : vector<4x8x8xf32>
    %55 = tpu.matmul %54, %43, %cst_15 {dimension_numbers = #tpu.dot_dimension_numbers<[2], [1], [1], [2], [0, 0, 0, 1, 1, 2], [0], [0]>} : vector<4x8x8xf32>, vector<4x8x8xf32>, vector<4x8x8xf32> -> vector<4x8x8xf32>
    %56 = vector.extract_strided_slice %55 {offsets = [0, 0, 0], sizes = [1, 8, 8], strides = [1, 1, 1]} : vector<4x8x8xf32> to vector<1x8x8xf32>
    %57 = vector.shape_cast %56 : vector<1x8x8xf32> to vector<8x8xf32>
    %58 = vector.extract_strided_slice %55 {offsets = [1, 0, 0], sizes = [1, 8, 8], strides = [1, 1, 1]} : vector<4x8x8xf32> to vector<1x8x8xf32>
    %59 = vector.shape_cast %58 : vector<1x8x8xf32> to vector<8x8xf32>
    %60 = vector.extract_strided_slice %55 {offsets = [2, 0, 0], sizes = [1, 8, 8], strides = [1, 1, 1]} : vector<4x8x8xf32> to vector<1x8x8xf32>
    %61 = vector.shape_cast %60 : vector<1x8x8xf32> to vector<8x8xf32>
    %62 = vector.extract_strided_slice %55 {offsets = [3, 0, 0], sizes = [1, 8, 8], strides = [1, 1, 1]} : vector<4x8x8xf32> to vector<1x8x8xf32>
    %63 = vector.shape_cast %62 : vector<1x8x8xf32> to vector<8x8xf32>
    %64 = tpu.concatenate %57, %59, %61, %63 in 1 : vector<8x8xf32>, vector<8x8xf32>, vector<8x8xf32>, vector<8x8xf32> -> vector<8x32xf32>
    %cst_16 = arith.constant dense<0.000000e+00> : vector<8x32xf32>
    %65 = tpu.matmul %64, %3, %cst_16 {dimension_numbers = #tpu.dot_dimension_numbers<[1], [0], [0], [1], [0, 0, 1, 1], [], []>} : vector<8x32xf32>, vector<32x32xf32>, vector<8x32xf32> -> vector<8x32xf32>
    %66 = vector.broadcast %7 : vector<1x32xf32> to vector<8x32xf32>
    %67 = arith.addf %65, %66 : vector<8x32xf32>
    %cst_17 = arith.constant dense<0.000000e+00> : vector<8x128xf32>
    %68 = tpu.matmul %67, %4, %cst_17 {dimension_numbers = #tpu.dot_dimension_numbers<[1], [0], [0], [1], [0, 0, 1, 1], [], []>} : vector<8x32xf32>, vector<32x128xf32>, vector<8x128xf32> -> vector<8x128xf32>
    %69 = vector.broadcast %8 : vector<1x128xf32> to vector<8x128xf32>
    %70 = arith.addf %68, %69 : vector<8x128xf32>
    %c0_18 = arith.constant 0 : index
    %c0_19 = arith.constant 0 : index
    %71 = vector.load %arg2[%c0_18, %c0_19] : memref<8x128xf32, #tpu.memory_space<vmem>>, vector<8x128xf32>
    tpu.vector_store %arg2[%c0_18, %c0_19], %70 {strides = array<i32>} : memref<8x128xf32, #tpu.memory_space<vmem>>, vector<8x128xf32>,
    return
  }
}

</mosaic_0001>

<llo_original>
// kernel: tpu_custom_call.1
$region0: #{tpu_custom_call.1}
  #allocation0 [shape = 'u32[]', space=smem, size = 0x4, offset = 0x4, fixed_abs, tag = 'smem constant byte address 0x4 - core index']
  #allocation1 [shape = 'u32[144,128]{1,0:T(1,128)}', space=vmem, size = 0x12000, scoped, tag = 'internal scratch']
  %s0 = inlined_call_operand.hbm [shape: f32[8,32], index: 0, kind: input, shape index: {}]
  %s1 = inlined_call_operand.hbm [shape: f32[136,128], index: 1, kind: input, shape index: {}]
  %s2 = inlined_call_operand.hbm [shape: f32[8,128], index: 2, kind: output, shape index: {}]
  %s3 = sld [smem:[#allocation0]]
  $region26: #{tpu_custom_call.1} parent=0
    _
  %s5 = ssub.s32 1, %s3
  %s6 = scalar_select 0, %s5, %s3
  $region1: #{tpu_custom_call.1} parent=0
    #allocation2 [shape = 'u8[4096]{0}', space=vmem, size = 0x1000, scoped, tag = 'input window, operand 0, single buffered']
    #allocation3 [shape = 's32[1]{0}', space=sflag, size = 0x4, scoped, tag = 'scoped memory for tpu_custom_call.1']
    #allocation4 [shape = 's32[1]{0}', space=sflag, size = 0x4, scoped, tag = 'scoped memory for tpu_custom_call.1']
    #allocation5 [shape = 'u8[69632]{0}', space=vmem, size = 0x11000, scoped, tag = 'input window, operand 1, single buffered']
    #allocation6 [shape = 's32[1]{0}', space=sflag, size = 0x4, scoped, tag = 'scoped memory for tpu_custom_call.1']
    #allocation7 [shape = 'u8[4096]{0}', space=vmem, size = 0x1000, scoped, tag = 'output window, operand 0, single buffered']
    %7 = vsyncpa [#allocation3], 0
    %8 = vsyncpa [#allocation6], 0
    %9 = vsyncpa [#allocation4], 0
    // Predicated region
    $region2: #{tpu_custom_call.1} parent=1 // pred_check
      _
    $region3: #{tpu_custom_call.1} parent=1 // pred_check_branch
      %11 = sbr.rel (0) target = $region5
    $region4: #{tpu_custom_call.1} parent=1 // pred_region
      %s13 = ssub.s32 128, 128
      %14 = vsyncadd [#allocation3], %s13
      %s16 = sshll.u32 [#allocation2], 4
      %s17 = int_to_ptr.vmem [resolvable:$true] %s16
      %19 = dma.hbm_to_vmem [thread:$0]  %s0, 128, %s17, [#allocation3]
    $region5: #{tpu_custom_call.1} parent=1 // pred_fallthru
      _
    // Predicated region
    $region6: #{tpu_custom_call.1} parent=1 // pred_check
      _
    $region7: #{tpu_custom_call.1} parent=1 // pred_check_branch
      %21 = sbr.rel (0) target = $region9
    $region8: #{tpu_custom_call.1} parent=1 // pred_region
      %s23 = ssub.s32 2176, 2176
      %24 = vsyncadd [#allocation6], %s23
      %s25 = sshll.u32 [#allocation5], 4
      %s26 = int_to_ptr.vmem [resolvable:$true] %s25
      %31 = dma.hbm_to_vmem [thread:$0]  %s1, 2176, %s26, [#allocation6], 128, 128, 8
    $region9: #{tpu_custom_call.1} parent=1 // pred_fallthru
      _
    // Predicated region
    $region10: #{tpu_custom_call.1} parent=1 // pred_check
      _
    $region11: #{tpu_custom_call.1} parent=1 // pred_check_branch
      %33 = sbr.rel (0) target = $region13
    $region12: #{tpu_custom_call.1} parent=1 // pred_region
      %34 = dma.done [#allocation3], 128
    $region13: #{tpu_custom_call.1} parent=1 // pred_fallthru
      _
    // Predicated region
    $region14: #{tpu_custom_call.1} parent=1 // pred_check
      _
    $region15: #{tpu_custom_call.1} parent=1 // pred_check_branch
      %36 = sbr.rel (0) target = $region17
    $region16: #{tpu_custom_call.1} parent=1 // pred_region
      %37 = dma.done [#allocation6], 2176
    $region17: #{tpu_custom_call.1} parent=1 // pred_fallthru
      _
    %v38 = vld [vmem:[#allocation2] sm:$0xff]
    %v39 = vld [vmem:[#allocation5] sm:$0xff]
    %v40 = vld [vmem:[#allocation5 + $0x8] sm:$0xff]
    %v41 = vld [vmem:[#allocation5 + $0x10] sm:$0xff]
    %v42 = vld [vmem:[#allocation5 + $0x18] sm:$0xff]
    %v43 = vld [vmem:[#allocation5 + $0x20] sm:$0xff]
    %v44 = vld [vmem:[#allocation5 + $0x28] sm:$0xff]
    %v45 = vld [vmem:[#allocation5 + $0x30] sm:$0xff]
    %v46 = vld [vmem:[#allocation5 + $0x38] sm:$0xff]
    %v47 = vld [vmem:[#allocation5 + $0x40] sm:$0xff]
    %v48 = vld [vmem:[#allocation5 + $0x48] sm:$0xff]
    %v49 = vld [vmem:[#allocation5 + $0x50] sm:$0xff]
    %v50 = vld [vmem:[#allocation5 + $0x58] sm:$0xff]
    %v51 = vld [vmem:[#allocation5 + $0x60] sm:$0xff]
    %v52 = vld [vmem:[#allocation5 + $0x68] sm:$0xff]
    %v53 = vld [vmem:[#allocation5 + $0x70] sm:$0xff]
    %v54 = vld [vmem:[#allocation5 + $0x78] sm:$0xff]
    %v55 = vld [vmem:[#allocation5 + $0x80] sm:$0x1]
    %v56 = vld [vmem:[#allocation5 + $0x81] sm:$0x1]
    %v57 = vld [vmem:[#allocation5 + $0x82] sm:$0x1]
    %v58 = vld [vmem:[#allocation5 + $0x83] sm:$0x1]
    %v59 = vlaneseq
    %v60 = vshrl.u32 %v59, 7
    %v61 = vsub.s32 0, %v60
    %v62 = vrot.slane %v55, %v61
    %vm63 = vcmask 261120
    %v65 = vsel %vm63, %v38, 0
    %67 = vmatprep.subr.mxu0 0.0
    %68 = vmatpush1.msra.mxu0 %v39
    %69 = vmatprep.subr.mxu0 0.0
    %70 = vmatpush1.msra.mxu0 %v40
    %71 = vmatprep.subr.mxu0 0.0
    %72 = vmatpush1.msra.mxu0 %v41
    %73 = vmatprep.subr.mxu0 0.0
    %74 = vmatpush1.msra.mxu0 %v42
    %75 = vmatprep.subr.mxu0 0.0
    %76 = vmatpush1.msra.mxu0 0.0
    %77 = vmatprep.subr.mxu0 0.0
    %78 = vmatpush1.msra.mxu0 0.0
    %79 = vmatprep.subr.mxu0 0.0
    %80 = vmatpush1.msra.mxu0 0.0
    %81 = vmatprep.subr.mxu0 0.0
    %82 = vmatpush1.msra.mxu0 0.0
    %83 = vmatprep.subr.mxu0 0.0
    %84 = vmatpush1.msra.mxu0 0.0
    %85 = vmatprep.subr.mxu0 0.0
    %86 = vmatpush1.msra.mxu0 0.0
    %87 = vmatprep.subr.mxu0 0.0
    %88 = vmatpush1.msra.mxu0 0.0
    %89 = vmatprep.subr.mxu0 0.0
    %90 = vmatpush1.msra.mxu0 0.0
    %91 = vmatprep.subr.mxu0 0.0
    %92 = vmatpush1.msra.mxu0 0.0
    %93 = vmatprep.subr.mxu0 0.0
    %94 = vmatpush1.msra.mxu0 0.0
    %95 = vmatprep.subr.mxu0 0.0
    %96 = vmatpush1.msra.mxu0 0.0
    %97 = vmatprep.subr.mxu0 0.0
    %98 = vmatpush1.msra.mxu0 0.0
    %99 = vmatprep.subr.mxu0 0.0
    %100 = vmatpush1.msra.mxu0 0.0
    %101 = vmatprep.subr.mxu0 0.0
    %102 = vmatpush1.msra.mxu0 0.0
    %103 = vmatprep.subr.mxu0 0.0
    %104 = vmatpush1.msra.mxu0 0.0
    %105 = vmatprep.subr.mxu0 0.0
    %106 = vmatpush1.msra.mxu0 0.0
    %107 = vmatprep.subr.mxu0 0.0
    %108 = vmatpush1.msra.mxu0 0.0
    %109 = vmatprep.subr.mxu0 0.0
    %110 = vmatpush1.msra.mxu0 0.0
    %111 = vmatprep.subr.mxu0 0.0
    %112 = vmatpush1.msra.mxu0 0.0
    %113 = vmatprep.subr.mxu0 0.0
    %114 = vmatpush1.msra.mxu0 0.0
    %115 = vmatprep.subr.mxu0 0.0
    %116 = vmatpush1.msra.mxu0 0.0
    %117 = vmatprep.subr.mxu0 0.0
    %118 = vmatpush1.msra.mxu0 0.0
    %119 = vmatprep.subr.mxu0 0.0
    %120 = vmatpush1.msra.mxu0 0.0
    %121 = vmatprep.subr.mxu0 0.0
    %122 = vmatpush1.msra.mxu0 0.0
    %123 = vmatprep.subr.mxu0 0.0
    %124 = vmatpush1.msra.mxu0 0.0
    %125 = vmatprep.subr.mxu0 0.0
    %126 = vmatpush1.msra.mxu0 0.0
    %127 = vmatprep.subr.mxu0 0.0
    %128 = vmatpush1.msra.mxu0 0.0
    %129 = vmatprep.subr.mxu0 0.0
    %130 = vmatpush1.msra.mxu0 0.0
    %131 = vmatprep.mubr.f32.mxu0 0.0
    %132 = vmatmul.mubr.f32.gmra.mrb[0].mxu0 %v65
    %v133 = vpop.f32.mrb[0].mxu0
    %v134 = vadd.f32 %v62, %v133
    %v135 = vpop.f32.mrb[0].mxu0
    %136 = vdwg.mxu0
    %v137 = vmax.f32 %v134, 0.0
    %v138 = vlaneseq
    %v139 = vshrl.u32 %v138, 7
    %v140 = vsub.s32 0, %v139
    %v141 = vrot.slane %v56, %v140
    %v143 = vsel %vm63, %v137, 0
    %145 = vmatprep.subr.mxu0 0.0
    %146 = vmatpush1.msra.mxu0 %v43
    %147 = vmatprep.subr.mxu0 0.0
    %148 = vmatpush1.msra.mxu0 %v44
    %149 = vmatprep.subr.mxu0 0.0
    %150 = vmatpush1.msra.mxu0 %v45
    %151 = vmatprep.subr.mxu0 0.0
    %152 = vmatpush1.msra.mxu0 %v46
    %153 = vmatprep.subr.mxu0 0.0
    %154 = vmatpush1.msra.mxu0 0.0
    %155 = vmatprep.subr.mxu0 0.0
    %156 = vmatpush1.msra.mxu0 0.0
    %157 = vmatprep.subr.mxu0 0.0
    %158 = vmatpush1.msra.mxu0 0.0
    %159 = vmatprep.subr.mxu0 0.0
    %160 = vmatpush1.msra.mxu0 0.0
    %161 = vmatprep.subr.mxu0 0.0
    %162 = vmatpush1.msra.mxu0 0.0
    %163 = vmatprep.subr.mxu0 0.0
    %164 = vmatpush1.msra.mxu0 0.0
    %165 = vmatprep.subr.mxu0 0.0
    %166 = vmatpush1.msra.mxu0 0.0
    %167 = vmatprep.subr.mxu0 0.0
    %168 = vmatpush1.msra.mxu0 0.0
    %169 = vmatprep.subr.mxu0 0.0
    %170 = vmatpush1.msra.mxu0 0.0
    %171 = vmatprep.subr.mxu0 0.0
    %172 = vmatpush1.msra.mxu0 0.0
    %173 = vmatprep.subr.mxu0 0.0
    %174 = vmatpush1.msra.mxu0 0.0
    %175 = vmatprep.subr.mxu0 0.0
    %176 = vmatpush1.msra.mxu0 0.0
    %177 = vmatprep.subr.mxu0 0.0
    %178 = vmatpush1.msra.mxu0 0.0
    %179 = vmatprep.subr.mxu0 0.0
    %180 = vmatpush1.msra.mxu0 0.0
    %181 = vmatprep.subr.mxu0 0.0
    %182 = vmatpush1.msra.mxu0 0.0
    %183 = vmatprep.subr.mxu0 0.0
    %184 = vmatpush1.msra.mxu0 0.0
    %185 = vmatprep.subr.mxu0 0.0
    %186 = vmatpush1.msra.mxu0 0.0
    %187 = vmatprep.subr.mxu0 0.0
    %188 = vmatpush1.msra.mxu0 0.0
    %189 = vmatprep.subr.mxu0 0.0
    %190 = vmatpush1.msra.mxu0 0.0
    %191 = vmatprep.subr.mxu0 0.0
    %192 = vmatpush1.msra.mxu0 0.0
    %193 = vmatprep.subr.mxu0 0.0
    %194 = vmatpush1.msra.mxu0 0.0
    %195 = vmatprep.subr.mxu0 0.0
    %196 = vmatpush1.msra.mxu0 0.0
    %197 = vmatprep.subr.mxu0 0.0
    %198 = vmatpush1.msra.mxu0 0.0
    %199 = vmatprep.subr.mxu0 0.0
    %200 = vmatpush1.msra.mxu0 0.0
    %201 = vmatprep.subr.mxu0 0.0
    %202 = vmatpush1.msra.mxu0 0.0
    %203 = vmatprep.subr.mxu0 0.0
    %204 = vmatpush1.msra.mxu0 0.0
    %205 = vmatprep.subr.mxu0 0.0
    %206 = vmatpush1.msra.mxu0 0.0
    %207 = vmatprep.subr.mxu0 0.0
    %208 = vmatpush1.msra.mxu0 0.0
    %209 = vmatprep.mubr.f32.mxu0 0.0
    %210 = vmatmul.mubr.f32.gmra.mrb[0].mxu0 %v143
    %v211 = vpop.f32.mrb[0].mxu0
    %v212 = vadd.f32 %v141, %v211
    %v213 = vpop.f32.mrb[0].mxu0
    %214 = vdwg.mxu0
    %216 = vrot.lane.b32.xlu0 %v212, 120
    %v217 = vpop.permute.xlu0 %216
    %218 = vrot.lane.b32.xlu0 %v212, 112
    %v219 = vpop.permute.xlu0 %218
    %220 = vrot.lane.b32.xlu0 %v212, 104
    %v221 = vpop.permute.xlu0 %220
    %222 = vrot.lane.b32.xlu0 %v212, 96
    %v223 = vpop.permute.xlu0 %222
    %vm224 = vcmask 64512
    %v225 = vsel %vm224, %v212, 0
    %v227 = vsel %vm224, %v223, 0
    %229 = vmatprep.subr.mxu0 0.0
    %230 = vmatpush1.xpose.msra.mxu0 %v227
    %231 = vmatprep.subr.mxu0 0.0
    %232 = vmatpush1.xpose.msra.mxu0 0.0
    %233 = vmatprep.subr.mxu0 0.0
    %234 = vmatpush1.xpose.msra.mxu0 0.0
    %235 = vmatprep.subr.mxu0 0.0
    %236 = vmatpush1.xpose.msra.mxu0 0.0
    %237 = vmatprep.subr.mxu0 0.0
    %238 = vmatpush1.xpose.msra.mxu0 0.0
    %239 = vmatprep.subr.mxu0 0.0
    %240 = vmatpush1.xpose.msra.mxu0 0.0
    %241 = vmatprep.subr.mxu0 0.0
    %242 = vmatpush1.xpose.msra.mxu0 0.0
    %243 = vmatprep.subr.mxu0 0.0
    %244 = vmatpush1.xpose.msra.mxu0 0.0
    %245 = vmatprep.subr.mxu0 0.0
    %246 = vmatpush1.xpose.msra.mxu0 0.0
    %247 = vmatprep.subr.mxu0 0.0
    %248 = vmatpush1.xpose.msra.mxu0 0.0
    %249 = vmatprep.subr.mxu0 0.0
    %250 = vmatpush1.xpose.msra.mxu0 0.0
    %251 = vmatprep.subr.mxu0 0.0
    %252 = vmatpush1.xpose.msra.mxu0 0.0
    %253 = vmatprep.subr.mxu0 0.0
    %254 = vmatpush1.xpose.msra.mxu0 0.0
    %255 = vmatprep.subr.mxu0 0.0
    %256 = vmatpush1.xpose.msra.mxu0 0.0
    %257 = vmatprep.subr.mxu0 0.0
    %258 = vmatpush1.xpose.msra.mxu0 0.0
    %259 = vmatprep.subr.mxu0 0.0
    %260 = vmatpush1.xpose.msra.mxu0 0.0
    %261 = vmatprep.subr.mxu0 0.0
    %262 = vmatpush1.xpose.msra.mxu0 0.0
    %263 = vmatprep.subr.mxu0 0.0
    %264 = vmatpush1.xpose.msra.mxu0 0.0
    %265 = vmatprep.subr.mxu0 0.0
    %266 = vmatpush1.xpose.msra.mxu0 0.0
    %267 = vmatprep.subr.mxu0 0.0
    %268 = vmatpush1.xpose.msra.mxu0 0.0
    %269 = vmatprep.subr.mxu0 0.0
    %270 = vmatpush1.xpose.msra.mxu0 0.0
    %271 = vmatprep.subr.mxu0 0.0
    %272 = vmatpush1.xpose.msra.mxu0 0.0
    %273 = vmatprep.subr.mxu0 0.0
    %274 = vmatpush1.xpose.msra.mxu0 0.0
    %275 = vmatprep.subr.mxu0 0.0
    %276 = vmatpush1.xpose.msra.mxu0 0.0
    %277 = vmatprep.subr.mxu0 0.0
    %278 = vmatpush1.xpose.msra.mxu0 0.0
    %279 = vmatprep.subr.mxu0 0.0
    %280 = vmatpush1.xpose.msra.mxu0 0.0
    %281 = vmatprep.subr.mxu0 0.0
    %282 = vmatpush1.xpose.msra.mxu0 0.0
    %283 = vmatprep.subr.mxu0 0.0
    %284 = vmatpush1.xpose.msra.mxu0 0.0
    %285 = vmatprep.subr.mxu0 0.0
    %286 = vmatpush1.xpose.msra.mxu0 0.0
    %287 = vmatprep.subr.mxu0 0.0
    %288 = vmatpush1.xpose.msra.mxu0 0.0
    %289 = vmatprep.subr.mxu0 0.0
    %290 = vmatpush1.xpose.msra.mxu0 0.0
    %291 = vmatprep.subr.mxu0 0.0
    %292 = vmatpush1.xpose.msra.mxu0 0.0
    %293 = vmatprep.mubr.f32.mxu0 0.0
    %294 = vmatmul.mubr.f32.gmra.mrb[0].mxu0 %v225
    %v295 = vpop.f32.mrb[0].mxu0
    %v296 = vadd.f32 0.0, %v295
    %v297 = vpop.f32.mrb[0].mxu0
    %298 = vdwg.mxu0
    %299 = vrot.lane.b32.xlu0 %v217, 96
    %v300 = vpop.permute.xlu0 %299
    %v301 = vsel %vm224, %v217, 0
    %v303 = vsel %vm224, %v300, 0
    %305 = vmatprep.subr.mxu0 0.0
    %306 = vmatpush1.xpose.msra.mxu0 %v303
    %307 = vmatprep.subr.mxu0 0.0
    %308 = vmatpush1.xpose.msra.mxu0 0.0
    %309 = vmatprep.subr.mxu0 0.0
    %310 = vmatpush1.xpose.msra.mxu0 0.0
    %311 = vmatprep.subr.mxu0 0.0
    %312 = vmatpush1.xpose.msra.mxu0 0.0
    %313 = vmatprep.subr.mxu0 0.0
    %314 = vmatpush1.xpose.msra.mxu0 0.0
    %315 = vmatprep.subr.mxu0 0.0
    %316 = vmatpush1.xpose.msra.mxu0 0.0
    %317 = vmatprep.subr.mxu0 0.0
    %318 = vmatpush1.xpose.msra.mxu0 0.0
    %319 = vmatprep.subr.mxu0 0.0
    %320 = vmatpush1.xpose.msra.mxu0 0.0
    %321 = vmatprep.subr.mxu0 0.0
    %322 = vmatpush1.xpose.msra.mxu0 0.0
    %323 = vmatprep.subr.mxu0 0.0
    %324 = vmatpush1.xpose.msra.mxu0 0.0
    %325 = vmatprep.subr.mxu0 0.0
    %326 = vmatpush1.xpose.msra.mxu0 0.0
    %327 = vmatprep.subr.mxu0 0.0
    %328 = vmatpush1.xpose.msra.mxu0 0.0
    %329 = vmatprep.subr.mxu0 0.0
    %330 = vmatpush1.xpose.msra.mxu0 0.0
    %331 = vmatprep.subr.mxu0 0.0
    %332 = vmatpush1.xpose.msra.mxu0 0.0
    %333 = vmatprep.subr.mxu0 0.0
    %334 = vmatpush1.xpose.msra.mxu0 0.0
    %335 = vmatprep.subr.mxu0 0.0
    %336 = vmatpush1.xpose.msra.mxu0 0.0
    %337 = vmatprep.subr.mxu0 0.0
    %338 = vmatpush1.xpose.msra.mxu0 0.0
    %339 = vmatprep.subr.mxu0 0.0
    %340 = vmatpush1.xpose.msra.mxu0 0.0
    %341 = vmatprep.subr.mxu0 0.0
    %342 = vmatpush1.xpose.msra.mxu0 0.0
    %343 = vmatprep.subr.mxu0 0.0
    %344 = vmatpush1.xpose.msra.mxu0 0.0
    %345 = vmatprep.subr.mxu0 0.0
    %346 = vmatpush1.xpose.msra.mxu0 0.0
    %347 = vmatprep.subr.mxu0 0.0
    %348 = vmatpush1.xpose.msra.mxu0 0.0
    %349 = vmatprep.subr.mxu0 0.0
    %350 = vmatpush1.xpose.msra.mxu0 0.0
    %351 = vmatprep.subr.mxu0 0.0
    %352 = vmatpush1.xpose.msra.mxu0 0.0
    %353 = vmatprep.subr.mxu0 0.0
    %354 = vmatpush1.xpose.msra.mxu0 0.0
    %355 = vmatprep.subr.mxu0 0.0
    %356 = vmatpush1.xpose.msra.mxu0 0.0
    %357 = vmatprep.subr.mxu0 0.0
    %358 = vmatpush1.xpose.msra.mxu0 0.0
    %359 = vmatprep.subr.mxu0 0.0
    %360 = vmatpush1.xpose.msra.mxu0 0.0
    %361 = vmatprep.subr.mxu0 0.0
    %362 = vmatpush1.xpose.msra.mxu0 0.0
    %363 = vmatprep.subr.mxu0 0.0
    %364 = vmatpush1.xpose.msra.mxu0 0.0
    %365 = vmatprep.subr.mxu0 0.0
    %366 = vmatpush1.xpose.msra.mxu0 0.0
    %367 = vmatprep.subr.mxu0 0.0
    %368 = vmatpush1.xpose.msra.mxu0 0.0
    %369 = vmatprep.mubr.f32.mxu0 0.0
    %370 = vmatmul.mubr.f32.gmra.mrb[0].mxu0 %v301
    %v371 = vpop.f32.mrb[0].mxu0
    %v372 = vadd.f32 0.0, %v371
    %v373 = vpop.f32.mrb[0].mxu0
    %374 = vdwg.mxu0
    %375 = vrot.lane.b32.xlu0 %v219, 96
    %v376 = vpop.permute.xlu0 %375
    %v377 = vsel %vm224, %v219, 0
    %v379 = vsel %vm224, %v376, 0
    %381 = vmatprep.subr.mxu0 0.0
    %382 = vmatpush1.xpose.msra.mxu0 %v379
    %383 = vmatprep.subr.mxu0 0.0
    %384 = vmatpush1.xpose.msra.mxu0 0.0
    %385 = vmatprep.subr.mxu0 0.0
    %386 = vmatpush1.xpose.msra.mxu0 0.0
    %387 = vmatprep.subr.mxu0 0.0
    %388 = vmatpush1.xpose.msra.mxu0 0.0
    %389 = vmatprep.subr.mxu0 0.0
    %390 = vmatpush1.xpose.msra.mxu0 0.0
    %391 = vmatprep.subr.mxu0 0.0
    %392 = vmatpush1.xpose.msra.mxu0 0.0
    %393 = vmatprep.subr.mxu0 0.0
    %394 = vmatpush1.xpose.msra.mxu0 0.0
    %395 = vmatprep.subr.mxu0 0.0
    %396 = vmatpush1.xpose.msra.mxu0 0.0
    %397 = vmatprep.subr.mxu0 0.0
    %398 = vmatpush1.xpose.msra.mxu0 0.0
    %399 = vmatprep.subr.mxu0 0.0
    %400 = vmatpush1.xpose.msra.mxu0 0.0
    %401 = vmatprep.subr.mxu0 0.0
    %402 = vmatpush1.xpose.msra.mxu0 0.0
    %403 = vmatprep.subr.mxu0 0.0
    %404 = vmatpush1.xpose.msra.mxu0 0.0
    %405 = vmatprep.subr.mxu0 0.0
    %406 = vmatpush1.xpose.msra.mxu0 0.0
    %407 = vmatprep.subr.mxu0 0.0
    %408 = vmatpush1.xpose.msra.mxu0 0.0
    %409 = vmatprep.subr.mxu0 0.0
    %410 = vmatpush1.xpose.msra.mxu0 0.0
    %411 = vmatprep.subr.mxu0 0.0
    %412 = vmatpush1.xpose.msra.mxu0 0.0
    %413 = vmatprep.subr.mxu0 0.0
    %414 = vmatpush1.xpose.msra.mxu0 0.0
    %415 = vmatprep.subr.mxu0 0.0
    %416 = vmatpush1.xpose.msra.mxu0 0.0
    %417 = vmatprep.subr.mxu0 0.0
    %418 = vmatpush1.xpose.msra.mxu0 0.0
    %419 = vmatprep.subr.mxu0 0.0
    %420 = vmatpush1.xpose.msra.mxu0 0.0
    %421 = vmatprep.subr.mxu0 0.0
    %422 = vmatpush1.xpose.msra.mxu0 0.0
    %423 = vmatprep.subr.mxu0 0.0
    %424 = vmatpush1.xpose.msra.mxu0 0.0
    %425 = vmatprep.subr.mxu0 0.0
    %426 = vmatpush1.xpose.msra.mxu0 0.0
    %427 = vmatprep.subr.mxu0 0.0
    %428 = vmatpush1.xpose.msra.mxu0 0.0
    %429 = vmatprep.subr.mxu0 0.0
    %430 = vmatpush1.xpose.msra.mxu0 0.0
    %431 = vmatprep.subr.mxu0 0.0
    %432 = vmatpush1.xpose.msra.mxu0 0.0
    %433 = vmatprep.subr.mxu0 0.0
    %434 = vmatpush1.xpose.msra.mxu0 0.0
    %435 = vmatprep.subr.mxu0 0.0
    %436 = vmatpush1.xpose.msra.mxu0 0.0
    %437 = vmatprep.subr.mxu0 0.0
    %438 = vmatpush1.xpose.msra.mxu0 0.0
    %439 = vmatprep.subr.mxu0 0.0
    %440 = vmatpush1.xpose.msra.mxu0 0.0
    %441 = vmatprep.subr.mxu0 0.0
    %442 = vmatpush1.xpose.msra.mxu0 0.0
    %443 = vmatprep.subr.mxu0 0.0
    %444 = vmatpush1.xpose.msra.mxu0 0.0
    %445 = vmatprep.mubr.f32.mxu0 0.0
    %446 = vmatmul.mubr.f32.gmra.mrb[0].mxu0 %v377
    %v447 = vpop.f32.mrb[0].mxu0
    %v448 = vadd.f32 0.0, %v447
    %v449 = vpop.f32.mrb[0].mxu0
    %450 = vdwg.mxu0
    %451 = vrot.lane.b32.xlu0 %v221, 96
    %v452 = vpop.permute.xlu0 %451
    %v453 = vsel %vm224, %v221, 0
    %v455 = vsel %vm224, %v452, 0
    %457 = vmatprep.subr.mxu0 0.0
    %458 = vmatpush1.xpose.msra.mxu0 %v455
    %459 = vmatprep.subr.mxu0 0.0
    %460 = vmatpush1.xpose.msra.mxu0 0.0
    %461 = vmatprep.subr.mxu0 0.0
    %462 = vmatpush1.xpose.msra.mxu0 0.0
    %463 = vmatprep.subr.mxu0 0.0
    %464 = vmatpush1.xpose.msra.mxu0 0.0
    %465 = vmatprep.subr.mxu0 0.0
    %466 = vmatpush1.xpose.msra.mxu0 0.0
    %467 = vmatprep.subr.mxu0 0.0
    %468 = vmatpush1.xpose.msra.mxu0 0.0
    %469 = vmatprep.subr.mxu0 0.0
    %470 = vmatpush1.xpose.msra.mxu0 0.0
    %471 = vmatprep.subr.mxu0 0.0
    %472 = vmatpush1.xpose.msra.mxu0 0.0
    %473 = vmatprep.subr.mxu0 0.0
    %474 = vmatpush1.xpose.msra.mxu0 0.0
    %475 = vmatprep.subr.mxu0 0.0
    %476 = vmatpush1.xpose.msra.mxu0 0.0
    %477 = vmatprep.subr.mxu0 0.0
    %478 = vmatpush1.xpose.msra.mxu0 0.0
    %479 = vmatprep.subr.mxu0 0.0
    %480 = vmatpush1.xpose.msra.mxu0 0.0
    %481 = vmatprep.subr.mxu0 0.0
    %482 = vmatpush1.xpose.msra.mxu0 0.0
    %483 = vmatprep.subr.mxu0 0.0
    %484 = vmatpush1.xpose.msra.mxu0 0.0
    %485 = vmatprep.subr.mxu0 0.0
    %486 = vmatpush1.xpose.msra.mxu0 0.0
    %487 = vmatprep.subr.mxu0 0.0
    %488 = vmatpush1.xpose.msra.mxu0 0.0
    %489 = vmatprep.subr.mxu0 0.0
    %490 = vmatpush1.xpose.msra.mxu0 0.0
    %491 = vmatprep.subr.mxu0 0.0
    %492 = vmatpush1.xpose.msra.mxu0 0.0
    %493 = vmatprep.subr.mxu0 0.0
    %494 = vmatpush1.xpose.msra.mxu0 0.0
    %495 = vmatprep.subr.mxu0 0.0
    %496 = vmatpush1.xpose.msra.mxu0 0.0
    %497 = vmatprep.subr.mxu0 0.0
    %498 = vmatpush1.xpose.msra.mxu0 0.0
    %499 = vmatprep.subr.mxu0 0.0
    %500 = vmatpush1.xpose.msra.mxu0 0.0
    %501 = vmatprep.subr.mxu0 0.0
    %502 = vmatpush1.xpose.msra.mxu0 0.0
    %503 = vmatprep.subr.mxu0 0.0
    %504 = vmatpush1.xpose.msra.mxu0 0.0
    %505 = vmatprep.subr.mxu0 0.0
    %506 = vmatpush1.xpose.msra.mxu0 0.0
    %507 = vmatprep.subr.mxu0 0.0
    %508 = vmatpush1.xpose.msra.mxu0 0.0
    %509 = vmatprep.subr.mxu0 0.0
    %510 = vmatpush1.xpose.msra.mxu0 0.0
    %511 = vmatprep.subr.mxu0 0.0
    %512 = vmatpush1.xpose.msra.mxu0 0.0
    %513 = vmatprep.subr.mxu0 0.0
    %514 = vmatpush1.xpose.msra.mxu0 0.0
    %515 = vmatprep.subr.mxu0 0.0
    %516 = vmatpush1.xpose.msra.mxu0 0.0
    %517 = vmatprep.subr.mxu0 0.0
    %518 = vmatpush1.xpose.msra.mxu0 0.0
    %519 = vmatprep.subr.mxu0 0.0
    %520 = vmatpush1.xpose.msra.mxu0 0.0
    %521 = vmatprep.mubr.f32.mxu0 0.0
    %522 = vmatmul.mubr.f32.gmra.mrb[0].mxu0 %v453
    %v523 = vpop.f32.mrb[0].mxu0
    %v524 = vadd.f32 0.0, %v523
    %v525 = vpop.f32.mrb[0].mxu0
    %526 = vdwg.mxu0
    %v527 = vsel %vm224, %v296, -inf
    %528 = vmax.xlane.f32.xlu0 %v527
    %v529 = vpop.xlane.xlu0 %528
    %v530 = vsel %vm224, %v372, -inf
    %531 = vmax.xlane.f32.xlu0 %v530
    %v532 = vpop.xlane.xlu0 %531
    %v533 = vsel %vm224, %v448, -inf
    %534 = vmax.xlane.f32.xlu0 %v533
    %v535 = vpop.xlane.xlu0 %534
    %v536 = vsel %vm224, %v524, -inf
    %537 = vmax.xlane.f32.xlu0 %v536
    %v538 = vpop.xlane.xlu0 %537
    %v539 = vsub.f32 %v296, %v529
    %v540 = vsub.f32 %v372, %v532
    %v541 = vsub.f32 %v448, %v535
    %v542 = vsub.f32 %v524, %v538
    %v543 = vmul.f32 %v539, 1.442695
    %v544 = vpow.pop %v543
    %v545 = vmul.f32 %v540, 1.442695
    %v546 = vpow.pop %v545
    %v547 = vmul.f32 %v541, 1.442695
    %v548 = vpow.pop %v547
    %v549 = vmul.f32 %v542, 1.442695
    %v550 = vpow.pop %v549
    %v551 = vsel %vm224, %v544, 0.0
    %552 = vadd.xlane.f32.xlu0 %v551
    %v553 = vpop.xlane.xlu0 %552
    %v554 = vsel %vm224, %v546, 0.0
    %555 = vadd.xlane.f32.xlu0 %v554
    %v556 = vpop.xlane.xlu0 %555
    %v557 = vsel %vm224, %v548, 0.0
    %558 = vadd.xlane.f32.xlu0 %v557
    %v559 = vpop.xlane.xlu0 %558
    %v560 = vsel %vm224, %v550, 0.0
    %561 = vadd.xlane.f32.xlu0 %v560
    %v562 = vpop.xlane.xlu0 %561
    %v563 = vrcp.pop %v553
    %v564 = vrcp.pop %v556
    %v565 = vrcp.pop %v559
    %v566 = vrcp.pop %v562
    %v567 = vmul.f32 %v544, %v563
    %v568 = vmul.f32 %v546, %v564
    %v569 = vmul.f32 %v548, %v565
    %v570 = vmul.f32 %v550, %v566
    %571 = vrot.lane.b32.xlu0 %v212, 64
    %v572 = vpop.permute.xlu0 %571
    %v575 = vsel %vm224, %v567, 0
    %577 = vmatprep.subr.mxu0 0.0
    %578 = vmatpush1.msra.mxu0 %v572
    %579 = vmatprep.subr.mxu0 0.0
    %580 = vmatpush1.msra.mxu0 0.0
    %581 = vmatprep.subr.mxu0 0.0
    %582 = vmatpush1.msra.mxu0 0.0
    %583 = vmatprep.subr.mxu0 0.0
    %584 = vmatpush1.msra.mxu0 0.0
    %585 = vmatprep.subr.mxu0 0.0
    %586 = vmatpush1.msra.mxu0 0.0
    %587 = vmatprep.subr.mxu0 0.0
    %588 = vmatpush1.msra.mxu0 0.0
    %589 = vmatprep.subr.mxu0 0.0
    %590 = vmatpush1.msra.mxu0 0.0
    %591 = vmatprep.subr.mxu0 0.0
    %592 = vmatpush1.msra.mxu0 0.0
    %593 = vmatprep.subr.mxu0 0.0
    %594 = vmatpush1.msra.mxu0 0.0
    %595 = vmatprep.subr.mxu0 0.0
    %596 = vmatpush1.msra.mxu0 0.0
    %597 = vmatprep.subr.mxu0 0.0
    %598 = vmatpush1.msra.mxu0 0.0
    %599 = vmatprep.subr.mxu0 0.0
    %600 = vmatpush1.msra.mxu0 0.0
    %601 = vmatprep.subr.mxu0 0.0
    %602 = vmatpush1.msra.mxu0 0.0
    %603 = vmatprep.subr.mxu0 0.0
    %604 = vmatpush1.msra.mxu0 0.0
    %605 = vmatprep.subr.mxu0 0.0
    %606 = vmatpush1.msra.mxu0 0.0
    %607 = vmatprep.subr.mxu0 0.0
    %608 = vmatpush1.msra.mxu0 0.0
    %609 = vmatprep.subr.mxu0 0.0
    %610 = vmatpush1.msra.mxu0 0.0
    %611 = vmatprep.subr.mxu0 0.0
    %612 = vmatpush1.msra.mxu0 0.0
    %613 = vmatprep.subr.mxu0 0.0
    %614 = vmatpush1.msra.mxu0 0.0
    %615 = vmatprep.subr.mxu0 0.0
    %616 = vmatpush1.msra.mxu0 0.0
    %617 = vmatprep.subr.mxu0 0.0
    %618 = vmatpush1.msra.mxu0 0.0
    %619 = vmatprep.subr.mxu0 0.0
    %620 = vmatpush1.msra.mxu0 0.0
    %621 = vmatprep.subr.mxu0 0.0
    %622 = vmatpush1.msra.mxu0 0.0
    %623 = vmatprep.subr.mxu0 0.0
    %624 = vmatpush1.msra.mxu0 0.0
    %625 = vmatprep.subr.mxu0 0.0
    %626 = vmatpush1.msra.mxu0 0.0
    %627 = vmatprep.subr.mxu0 0.0
    %628 = vmatpush1.msra.mxu0 0.0
    %629 = vmatprep.subr.mxu0 0.0
    %630 = vmatpush1.msra.mxu0 0.0
    %631 = vmatprep.subr.mxu0 0.0
    %632 = vmatpush1.msra.mxu0 0.0
    %633 = vmatprep.subr.mxu0 0.0
    %634 = vmatpush1.msra.mxu0 0.0
    %635 = vmatprep.subr.mxu0 0.0
    %636 = vmatpush1.msra.mxu0 0.0
    %637 = vmatprep.subr.mxu0 0.0
    %638 = vmatpush1.msra.mxu0 0.0
    %639 = vmatprep.subr.mxu0 0.0
    %640 = vmatpush1.msra.mxu0 0.0
    %641 = vmatprep.mubr.f32.mxu0 0.0
    %642 = vmatmul.mubr.f32.gmra.mrb[0].mxu0 %v575
    %v643 = vpop.f32.mrb[0].mxu0
    %v644 = vadd.f32 0.0, %v643
    %v645 = vpop.f32.mrb[0].mxu0
    %646 = vdwg.mxu0
    %647 = vrot.lane.b32.xlu0 %v217, 64
    %v648 = vpop.permute.xlu0 %647
    %v651 = vsel %vm224, %v568, 0
    %653 = vmatprep.subr.mxu0 0.0
    %654 = vmatpush1.msra.mxu0 %v648
    %655 = vmatprep.subr.mxu0 0.0
    %656 = vmatpush1.msra.mxu0 0.0
    %657 = vmatprep.subr.mxu0 0.0
    %658 = vmatpush1.msra.mxu0 0.0
    %659 = vmatprep.subr.mxu0 0.0
    %660 = vmatpush1.msra.mxu0 0.0
    %661 = vmatprep.subr.mxu0 0.0
    %662 = vmatpush1.msra.mxu0 0.0
    %663 = vmatprep.subr.mxu0 0.0
    %664 = vmatpush1.msra.mxu0 0.0
    %665 = vmatprep.subr.mxu0 0.0
    %666 = vmatpush1.msra.mxu0 0.0
    %667 = vmatprep.subr.mxu0 0.0
    %668 = vmatpush1.msra.mxu0 0.0
    %669 = vmatprep.subr.mxu0 0.0
    %670 = vmatpush1.msra.mxu0 0.0
    %671 = vmatprep.subr.mxu0 0.0
    %672 = vmatpush1.msra.mxu0 0.0
    %673 = vmatprep.subr.mxu0 0.0
    %674 = vmatpush1.msra.mxu0 0.0
    %675 = vmatprep.subr.mxu0 0.0
    %676 = vmatpush1.msra.mxu0 0.0
    %677 = vmatprep.subr.mxu0 0.0
    %678 = vmatpush1.msra.mxu0 0.0
    %679 = vmatprep.subr.mxu0 0.0
    %680 = vmatpush1.msra.mxu0 0.0
    %681 = vmatprep.subr.mxu0 0.0
    %682 = vmatpush1.msra.mxu0 0.0
    %683 = vmatprep.subr.mxu0 0.0
    %684 = vmatpush1.msra.mxu0 0.0
    %685 = vmatprep.subr.mxu0 0.0
    %686 = vmatpush1.msra.mxu0 0.0
    %687 = vmatprep.subr.mxu0 0.0
    %688 = vmatpush1.msra.mxu0 0.0
    %689 = vmatprep.subr.mxu0 0.0
    %690 = vmatpush1.msra.mxu0 0.0
    %691 = vmatprep.subr.mxu0 0.0
    %692 = vmatpush1.msra.mxu0 0.0
    %693 = vmatprep.subr.mxu0 0.0
    %694 = vmatpush1.msra.mxu0 0.0
    %695 = vmatprep.subr.mxu0 0.0
    %696 = vmatpush1.msra.mxu0 0.0
    %697 = vmatprep.subr.mxu0 0.0
    %698 = vmatpush1.msra.mxu0 0.0
    %699 = vmatprep.subr.mxu0 0.0
    %700 = vmatpush1.msra.mxu0 0.0
    %701 = vmatprep.subr.mxu0 0.0
    %702 = vmatpush1.msra.mxu0 0.0
    %703 = vmatprep.subr.mxu0 0.0
    %704 = vmatpush1.msra.mxu0 0.0
    %705 = vmatprep.subr.mxu0 0.0
    %706 = vmatpush1.msra.mxu0 0.0
    %707 = vmatprep.subr.mxu0 0.0
    %708 = vmatpush1.msra.mxu0 0.0
    %709 = vmatprep.subr.mxu0 0.0
    %710 = vmatpush1.msra.mxu0 0.0
    %711 = vmatprep.subr.mxu0 0.0
    %712 = vmatpush1.msra.mxu0 0.0
    %713 = vmatprep.subr.mxu0 0.0
    %714 = vmatpush1.msra.mxu0 0.0
    %715 = vmatprep.subr.mxu0 0.0
    %716 = vmatpush1.msra.mxu0 0.0
    %717 = vmatprep.mubr.f32.mxu0 0.0
    %718 = vmatmul.mubr.f32.gmra.mrb[0].mxu0 %v651
    %v719 = vpop.f32.mrb[0].mxu0
    %v720 = vadd.f32 0.0, %v719
    %v721 = vpop.f32.mrb[0].mxu0
    %722 = vdwg.mxu0
    %723 = vrot.lane.b32.xlu0 %v219, 64
    %v724 = vpop.permute.xlu0 %723
    %v727 = vsel %vm224, %v569, 0
    %729 = vmatprep.subr.mxu0 0.0
    %730 = vmatpush1.msra.mxu0 %v724
    %731 = vmatprep.subr.mxu0 0.0
    %732 = vmatpush1.msra.mxu0 0.0
    %733 = vmatprep.subr.mxu0 0.0
    %734 = vmatpush1.msra.mxu0 0.0
    %735 = vmatprep.subr.mxu0 0.0
    %736 = vmatpush1.msra.mxu0 0.0
    %737 = vmatprep.subr.mxu0 0.0
    %738 = vmatpush1.msra.mxu0 0.0
    %739 = vmatprep.subr.mxu0 0.0
    %740 = vmatpush1.msra.mxu0 0.0
    %741 = vmatprep.subr.mxu0 0.0
    %742 = vmatpush1.msra.mxu0 0.0
    %743 = vmatprep.subr.mxu0 0.0
    %744 = vmatpush1.msra.mxu0 0.0
    %745 = vmatprep.subr.mxu0 0.0
    %746 = vmatpush1.msra.mxu0 0.0
    %747 = vmatprep.subr.mxu0 0.0
    %748 = vmatpush1.msra.mxu0 0.0
    %749 = vmatprep.subr.mxu0 0.0
    %750 = vmatpush1.msra.mxu0 0.0
    %751 = vmatprep.subr.mxu0 0.0
    %752 = vmatpush1.msra.mxu0 0.0
    %753 = vmatprep.subr.mxu0 0.0
    %754 = vmatpush1.msra.mxu0 0.0
    %755 = vmatprep.subr.mxu0 0.0
    %756 = vmatpush1.msra.mxu0 0.0
    %757 = vmatprep.subr.mxu0 0.0
    %758 = vmatpush1.msra.mxu0 0.0
    %759 = vmatprep.subr.mxu0 0.0
    %760 = vmatpush1.msra.mxu0 0.0
    %761 = vmatprep.subr.mxu0 0.0
    %762 = vmatpush1.msra.mxu0 0.0
    %763 = vmatprep.subr.mxu0 0.0
    %764 = vmatpush1.msra.mxu0 0.0
    %765 = vmatprep.subr.mxu0 0.0
    %766 = vmatpush1.msra.mxu0 0.0
    %767 = vmatprep.subr.mxu0 0.0
    %768 = vmatpush1.msra.mxu0 0.0
    %769 = vmatprep.subr.mxu0 0.0
    %770 = vmatpush1.msra.mxu0 0.0
    %771 = vmatprep.subr.mxu0 0.0
    %772 = vmatpush1.msra.mxu0 0.0
    %773 = vmatprep.subr.mxu0 0.0
    %774 = vmatpush1.msra.mxu0 0.0
    %775 = vmatprep.subr.mxu0 0.0
    %776 = vmatpush1.msra.mxu0 0.0
    %777 = vmatprep.subr.mxu0 0.0
    %778 = vmatpush1.msra.mxu0 0.0
    %779 = vmatprep.subr.mxu0 0.0
    %780 = vmatpush1.msra.mxu0 0.0
    %781 = vmatprep.subr.mxu0 0.0
    %782 = vmatpush1.msra.mxu0 0.0
    %783 = vmatprep.subr.mxu0 0.0
    %784 = vmatpush1.msra.mxu0 0.0
    %785 = vmatprep.subr.mxu0 0.0
    %786 = vmatpush1.msra.mxu0 0.0
    %787 = vmatprep.subr.mxu0 0.0
    %788 = vmatpush1.msra.mxu0 0.0
    %789 = vmatprep.subr.mxu0 0.0
    %790 = vmatpush1.msra.mxu0 0.0
    %791 = vmatprep.subr.mxu0 0.0
    %792 = vmatpush1.msra.mxu0 0.0
    %793 = vmatprep.mubr.f32.mxu0 0.0
    %794 = vmatmul.mubr.f32.gmra.mrb[0].mxu0 %v727
    %v795 = vpop.f32.mrb[0].mxu0
    %v796 = vadd.f32 0.0, %v795
    %v797 = vpop.f32.mrb[0].mxu0
    %798 = vdwg.mxu0
    %799 = vrot.lane.b32.xlu0 %v221, 64
    %v800 = vpop.permute.xlu0 %799
    %v803 = vsel %vm224, %v570, 0
    %805 = vmatprep.subr.mxu0 0.0
    %806 = vmatpush1.msra.mxu0 %v800
    %807 = vmatprep.subr.mxu0 0.0
    %808 = vmatpush1.msra.mxu0 0.0
    %809 = vmatprep.subr.mxu0 0.0
    %810 = vmatpush1.msra.mxu0 0.0
    %811 = vmatprep.subr.mxu0 0.0
    %812 = vmatpush1.msra.mxu0 0.0
    %813 = vmatprep.subr.mxu0 0.0
    %814 = vmatpush1.msra.mxu0 0.0
    %815 = vmatprep.subr.mxu0 0.0
    %816 = vmatpush1.msra.mxu0 0.0
    %817 = vmatprep.subr.mxu0 0.0
    %818 = vmatpush1.msra.mxu0 0.0
    %819 = vmatprep.subr.mxu0 0.0
    %820 = vmatpush1.msra.mxu0 0.0
    %821 = vmatprep.subr.mxu0 0.0
    %822 = vmatpush1.msra.mxu0 0.0
    %823 = vmatprep.subr.mxu0 0.0
    %824 = vmatpush1.msra.mxu0 0.0
    %825 = vmatprep.subr.mxu0 0.0
    %826 = vmatpush1.msra.mxu0 0.0
    %827 = vmatprep.subr.mxu0 0.0
    %828 = vmatpush1.msra.mxu0 0.0
    %829 = vmatprep.subr.mxu0 0.0
    %830 = vmatpush1.msra.mxu0 0.0
    %831 = vmatprep.subr.mxu0 0.0
    %832 = vmatpush1.msra.mxu0 0.0
    %833 = vmatprep.subr.mxu0 0.0
    %834 = vmatpush1.msra.mxu0 0.0
    %835 = vmatprep.subr.mxu0 0.0
    %836 = vmatpush1.msra.mxu0 0.0
    %837 = vmatprep.subr.mxu0 0.0
    %838 = vmatpush1.msra.mxu0 0.0
    %839 = vmatprep.subr.mxu0 0.0
    %840 = vmatpush1.msra.mxu0 0.0
    %841 = vmatprep.subr.mxu0 0.0
    %842 = vmatpush1.msra.mxu0 0.0
    %843 = vmatprep.subr.mxu0 0.0
    %844 = vmatpush1.msra.mxu0 0.0
    %845 = vmatprep.subr.mxu0 0.0
    %846 = vmatpush1.msra.mxu0 0.0
    %847 = vmatprep.subr.mxu0 0.0
    %848 = vmatpush1.msra.mxu0 0.0
    %849 = vmatprep.subr.mxu0 0.0
    %850 = vmatpush1.msra.mxu0 0.0
    %851 = vmatprep.subr.mxu0 0.0
    %852 = vmatpush1.msra.mxu0 0.0
    %853 = vmatprep.subr.mxu0 0.0
    %854 = vmatpush1.msra.mxu0 0.0
    %855 = vmatprep.subr.mxu0 0.0
    %856 = vmatpush1.msra.mxu0 0.0
    %857 = vmatprep.subr.mxu0 0.0
    %858 = vmatpush1.msra.mxu0 0.0
    %859 = vmatprep.subr.mxu0 0.0
    %860 = vmatpush1.msra.mxu0 0.0
    %861 = vmatprep.subr.mxu0 0.0
    %862 = vmatpush1.msra.mxu0 0.0
    %863 = vmatprep.subr.mxu0 0.0
    %864 = vmatpush1.msra.mxu0 0.0
    %865 = vmatprep.subr.mxu0 0.0
    %866 = vmatpush1.msra.mxu0 0.0
    %867 = vmatprep.subr.mxu0 0.0
    %868 = vmatpush1.msra.mxu0 0.0
    %869 = vmatprep.mubr.f32.mxu0 0.0
    %870 = vmatmul.mubr.f32.gmra.mrb[0].mxu0 %v803
    %v871 = vpop.f32.mrb[0].mxu0
    %v872 = vadd.f32 0.0, %v871
    %v873 = vpop.f32.mrb[0].mxu0
    %874 = vdwg.mxu0
    %876 = vrot.lane.b32.xlu0 %v720, 8
    %v877 = vpop.permute.xlu0 %876
    %880 = vrot.lane.b32.xlu0 %v796, 16
    %v881 = vpop.permute.xlu0 %880
    %884 = vrot.lane.b32.xlu0 %v872, 24
    %v885 = vpop.permute.xlu0 %884
    %v887 = vsel %vm224, %v644, %v877
    %vm888 = vcmask 130048
    %v889 = vsel %vm888, %v887, %v881
    %vm890 = vcmask 195584
    %v891 = vsel %vm890, %v889, %v885
    %v892 = vlaneseq
    %v893 = vshrl.u32 %v892, 7
    %v894 = vsub.s32 0, %v893
    %v895 = vrot.slane %v57, %v894
    %v897 = vsel %vm63, %v891, 0
    %899 = vmatprep.subr.mxu0 0.0
    %900 = vmatpush1.msra.mxu0 %v47
    %901 = vmatprep.subr.mxu0 0.0
    %902 = vmatpush1.msra.mxu0 %v48
    %903 = vmatprep.subr.mxu0 0.0
    %904 = vmatpush1.msra.mxu0 %v49
    %905 = vmatprep.subr.mxu0 0.0
    %906 = vmatpush1.msra.mxu0 %v50
    %907 = vmatprep.subr.mxu0 0.0
    %908 = vmatpush1.msra.mxu0 0.0
    %909 = vmatprep.subr.mxu0 0.0
    %910 = vmatpush1.msra.mxu0 0.0
    %911 = vmatprep.subr.mxu0 0.0
    %912 = vmatpush1.msra.mxu0 0.0
    %913 = vmatprep.subr.mxu0 0.0
    %914 = vmatpush1.msra.mxu0 0.0
    %915 = vmatprep.subr.mxu0 0.0
    %916 = vmatpush1.msra.mxu0 0.0
    %917 = vmatprep.subr.mxu0 0.0
    %918 = vmatpush1.msra.mxu0 0.0
    %919 = vmatprep.subr.mxu0 0.0
    %920 = vmatpush1.msra.mxu0 0.0
    %921 = vmatprep.subr.mxu0 0.0
    %922 = vmatpush1.msra.mxu0 0.0
    %923 = vmatprep.subr.mxu0 0.0
    %924 = vmatpush1.msra.mxu0 0.0
    %925 = vmatprep.subr.mxu0 0.0
    %926 = vmatpush1.msra.mxu0 0.0
    %927 = vmatprep.subr.mxu0 0.0
    %928 = vmatpush1.msra.mxu0 0.0
    %929 = vmatprep.subr.mxu0 0.0
    %930 = vmatpush1.msra.mxu0 0.0
    %931 = vmatprep.subr.mxu0 0.0
    %932 = vmatpush1.msra.mxu0 0.0
    %933 = vmatprep.subr.mxu0 0.0
    %934 = vmatpush1.msra.mxu0 0.0
    %935 = vmatprep.subr.mxu0 0.0
    %936 = vmatpush1.msra.mxu0 0.0
    %937 = vmatprep.subr.mxu0 0.0
    %938 = vmatpush1.msra.mxu0 0.0
    %939 = vmatprep.subr.mxu0 0.0
    %940 = vmatpush1.msra.mxu0 0.0
    %941 = vmatprep.subr.mxu0 0.0
    %942 = vmatpush1.msra.mxu0 0.0
    %943 = vmatprep.subr.mxu0 0.0
    %944 = vmatpush1.msra.mxu0 0.0
    %945 = vmatprep.subr.mxu0 0.0
    %946 = vmatpush1.msra.mxu0 0.0
    %947 = vmatprep.subr.mxu0 0.0
    %948 = vmatpush1.msra.mxu0 0.0
    %949 = vmatprep.subr.mxu0 0.0
    %950 = vmatpush1.msra.mxu0 0.0
    %951 = vmatprep.subr.mxu0 0.0
    %952 = vmatpush1.msra.mxu0 0.0
    %953 = vmatprep.subr.mxu0 0.0
    %954 = vmatpush1.msra.mxu0 0.0
    %955 = vmatprep.subr.mxu0 0.0
    %956 = vmatpush1.msra.mxu0 0.0
    %957 = vmatprep.subr.mxu0 0.0
    %958 = vmatpush1.msra.mxu0 0.0
    %959 = vmatprep.subr.mxu0 0.0
    %960 = vmatpush1.msra.mxu0 0.0
    %961 = vmatprep.subr.mxu0 0.0
    %962 = vmatpush1.msra.mxu0 0.0
    %963 = vmatprep.mubr.f32.mxu0 0.0
    %964 = vmatmul.mubr.f32.gmra.mrb[0].mxu0 %v897
    %v965 = vpop.f32.mrb[0].mxu0
    %v966 = vadd.f32 %v895, %v965
    %v967 = vpop.f32.mrb[0].mxu0
    %968 = vdwg.mxu0
    %v969 = vlaneseq
    %v970 = vshrl.u32 %v969, 7
    %v971 = vsub.s32 0, %v970
    %v972 = vrot.slane %v58, %v971
    %v974 = vsel %vm63, %v966, 0
    %976 = vmatprep.subr.mxu0 0.0
    %977 = vmatpush1.msra.mxu0 %v51
    %978 = vmatprep.subr.mxu0 0.0
    %979 = vmatpush1.msra.mxu0 %v52
    %980 = vmatprep.subr.mxu0 0.0
    %981 = vmatpush1.msra.mxu0 %v53
    %982 = vmatprep.subr.mxu0 0.0
    %983 = vmatpush1.msra.mxu0 %v54
    %984 = vmatprep.subr.mxu0 0.0
    %985 = vmatpush1.msra.mxu0 0.0
    %986 = vmatprep.subr.mxu0 0.0
    %987 = vmatpush1.msra.mxu0 0.0
    %988 = vmatprep.subr.mxu0 0.0
    %989 = vmatpush1.msra.mxu0 0.0
    %990 = vmatprep.subr.mxu0 0.0
    %991 = vmatpush1.msra.mxu0 0.0
    %992 = vmatprep.subr.mxu0 0.0
    %993 = vmatpush1.msra.mxu0 0.0
    %994 = vmatprep.subr.mxu0 0.0
    %995 = vmatpush1.msra.mxu0 0.0
    %996 = vmatprep.subr.mxu0 0.0
    %997 = vmatpush1.msra.mxu0 0.0
    %998 = vmatprep.subr.mxu0 0.0
    %999 = vmatpush1.msra.mxu0 0.0
    %1000 = vmatprep.subr.mxu0 0.0
    %1001 = vmatpush1.msra.mxu0 0.0
    %1002 = vmatprep.subr.mxu0 0.0
    %1003 = vmatpush1.msra.mxu0 0.0
    %1004 = vmatprep.subr.mxu0 0.0
    %1005 = vmatpush1.msra.mxu0 0.0
    %1006 = vmatprep.subr.mxu0 0.0
    %1007 = vmatpush1.msra.mxu0 0.0
    %1008 = vmatprep.subr.mxu0 0.0
    %1009 = vmatpush1.msra.mxu0 0.0
    %1010 = vmatprep.subr.mxu0 0.0
    %1011 = vmatpush1.msra.mxu0 0.0
    %1012 = vmatprep.subr.mxu0 0.0
    %1013 = vmatpush1.msra.mxu0 0.0
    %1014 = vmatprep.subr.mxu0 0.0
    %1015 = vmatpush1.msra.mxu0 0.0
    %1016 = vmatprep.subr.mxu0 0.0
    %1017 = vmatpush1.msra.mxu0 0.0
    %1018 = vmatprep.subr.mxu0 0.0
    %1019 = vmatpush1.msra.mxu0 0.0
    %1020 = vmatprep.subr.mxu0 0.0
    %1021 = vmatpush1.msra.mxu0 0.0
    %1022 = vmatprep.subr.mxu0 0.0
    %1023 = vmatpush1.msra.mxu0 0.0
    %1024 = vmatprep.subr.mxu0 0.0
    %1025 = vmatpush1.msra.mxu0 0.0
    %1026 = vmatprep.subr.mxu0 0.0
    %1027 = vmatpush1.msra.mxu0 0.0
    %1028 = vmatprep.subr.mxu0 0.0
    %1029 = vmatpush1.msra.mxu0 0.0
    %1030 = vmatprep.subr.mxu0 0.0
    %1031 = vmatpush1.msra.mxu0 0.0
    %1032 = vmatprep.subr.mxu0 0.0
    %1033 = vmatpush1.msra.mxu0 0.0
    %1034 = vmatprep.subr.mxu0 0.0
    %1035 = vmatpush1.msra.mxu0 0.0
    %1036 = vmatprep.subr.mxu0 0.0
    %1037 = vmatpush1.msra.mxu0 0.0
    %1038 = vmatprep.subr.mxu0 0.0
    %1039 = vmatpush1.msra.mxu0 0.0
    %1040 = vmatprep.mubr.f32.mxu0 0.0
    %1041 = vmatmul.mubr.f32.gmra.mrb[0].mxu0 %v974
    %v1042 = vpop.f32.mrb[0].mxu0
    %v1043 = vadd.f32 %v972, %v1042
    %v1044 = vpop.f32.mrb[0].mxu0
    %1045 = vdwg.mxu0
    %1046 = vst [vmem:[#allocation7] sm:$0xff] %v1043
    // Predicated region
    $region18: #{tpu_custom_call.1} parent=1 // pred_check
      _
    $region19: #{tpu_custom_call.1} parent=1 // pred_check_branch
      %1048 = sbr.rel (0) target = $region21
    $region20: #{tpu_custom_call.1} parent=1 // pred_region
      %s1050 = ssub.s32 128, 128
      %1051 = vsyncadd [#allocation4], %s1050
      %s1053 = sshll.u32 [#allocation7], 4
      %s1054 = int_to_ptr.vmem [resolvable:$true] %s1053
      %1056 = dma.vmem_to_hbm [thread:$0]  %s1054, 128, %s2, [#allocation4]
    $region21: #{tpu_custom_call.1} parent=1 // pred_fallthru
      _
    // Predicated region
    $region22: #{tpu_custom_call.1} parent=1 // pred_check
      _
    $region23: #{tpu_custom_call.1} parent=1 // pred_check_branch
      %1058 = sbr.rel (0) target = $region25
    $region24: #{tpu_custom_call.1} parent=1 // pred_region
      %1059 = dma.done [#allocation4], 128
    $region25: #{tpu_custom_call.1} parent=1 // pred_fallthru
      _
    %1060 = vsyncpa [#allocation3], 1
    %1061 = vsyncpa [#allocation6], 1
    %1062 = vsyncpa [#allocation4], 1

</llo_original>
